<compile_context>
chip_gen: v7x
topology: tpu7x:2x2x1
jax: 0.10.0
libtpu: 0.0.40
codegen_flags: <defaults>
</compile_context>

<pallas_src>
import jax
import jax.numpy as jnp
from jax import lax
from jax.experimental import pallas as pl
from jax.experimental.pallas import tpu as pltpu

# ----------------------------- configuration -----------------------------
BATCH = 2
SIDE = 16                     # input spatial size (H = W)
SIDE2 = 2 * SIDE              # output spatial size after 2x upsample
P = SIDE * SIDE               # 256  (lane axis for the 16x16 stages)
P2 = SIDE2 * SIDE2            # 1024 (lane axis for the 32x32 stage)
IN_CH = 4                     # skip-connection channels (UpBlock in_channels)
PREV_OUT_CH = 8               # hidden_states channels (prev_output_channel)
OUT_CH = 8                    # out_channels
EMB_CH = 16                   # class_emb_channels
GROUPS = 4                    # norm_num_groups (divides 12 and 8)
EPS = 1e-6                    # norm_eps
C_IN_RES = PREV_OUT_CH + IN_CH   # 12 = ResnetBlock in_channels
C_PAD = 16                    # channel count padded to a sublane-tile multiple

# Calibrated in __main__ so the conv tap direction is independent of the exact
# rotate convention of pltpu.roll on the installed jax/Mosaic version.
_ROLL_MATCHES_JNP = True


def _probe_roll_matches_jnp():
    """Returns True iff pltpu.roll(x, s, ax) == jnp.roll(x, s, ax)."""
    def kern(x_ref, o_ref):
        o_ref[...] = pltpu.roll(x_ref[...], 1, 1)
    x = jnp.arange(8 * 128, dtype=jnp.float32).reshape(8, 128)
    y = pl.pallas_call(
        kern, out_shape=jax.ShapeDtypeStruct((8, 128), jnp.float32))(x)
    return float(jax.device_get(y)[0, 0]) == 127.0


def _shift_amount(off, period):
    """Static rotate amount so that rolled[i] == x[(i + off) % period]."""
    if _ROLL_MATCHES_JNP:
        return (-off) % period
    return off % period


# ----------------------------- in-kernel helpers -----------------------------

def _group_norm_silu(x, gamma, beta, *, groups, cpg, eps):
    """GroupNorm (affine) + SiLU in C-major layout.

    x: (C, P), channels on sublanes.  Only channels [0, groups*cpg) are real; any
    zero padding channels are excluded via the per-group masks and come out 0
    (their gamma/beta are also zero-padded)."""
    c = x.shape[0]
    cnt = float(cpg * x.shape[1])
    ch = lax.broadcasted_iota(jnp.int32, (c, 1), 0)
    y = jnp.zeros_like(x)
    for g in range(groups):                      # static, tiny group count
        mf = ((ch // cpg) == g).astype(jnp.float32)       # (C, 1)
        mean = jnp.sum(x * mf) / cnt
        xc = x - mean
        var = jnp.sum(xc * xc * mf) / cnt                 # two-pass variance (f32)
        y = y + (xc * lax.rsqrt(var + eps)) * mf
    y = y * gamma + beta
    return y * jax.nn.sigmoid(y)                          # SiLU


def _build_patches(x, patches_ref, *, h, w):
    """3x3 'same'-padding im2col of x written into a VMEM scratch.

    x: (C, h*w) C-major, spatial flattened row-major.
    patches_ref: (9*C, h*w); row block t = (dy+1)*3 + (dx+1) holds x shifted by
    (dy, dx) with out-of-image taps zeroed (in-kernel padding)."""
    c, p = x.shape
    pos = lax.broadcasted_iota(jnp.int32, (1, p), 1)
    py = pos // w
    px = pos % w
    t = 0
    for dy in (-1, 0, 1):
        for dx in (-1, 0, 1):
            off = dy * w + dx
            amt = _shift_amount(off, p)
            shifted = x if amt == 0 else pltpu.roll(x, amt, 1)
            valid = ((py + dy >= 0) & (py + dy < h) &
                     (px + dx >= 0) & (px + dx < w))
            patches_ref[t * c:(t + 1) * c, :] = shifted * valid.astype(jnp.float32)
            t += 1


# ----------------------------- the fused kernel -----------------------------

def upblock_kernel(hid_ref, res_ref, emb_ref,
                   g1_ref, b1_ref, w1_ref, cb1_ref,
                   we_ref, be_ref,
                   g2_ref, b2_ref, w2_ref, cb2_ref,
                   wsk_ref, bsk_ref,
                   wup_ref, bup_ref,
                   s_ref,
                   o_ref,
                   xcat_ref, pat1_ref, pat2_ref, patu_ref):
    f32 = jnp.float32

    # --- torch.cat([hidden, res], dim=1), channel-padded to C_PAD sublanes ---
    xcat_ref[0:PREV_OUT_CH, :] = hid_ref[0]
    xcat_ref[PREV_OUT_CH:C_PAD, :] = jnp.zeros((C_PAD - PREV_OUT_CH, P), f32)
    xcat_ref[PREV_OUT_CH:PREV_OUT_CH + IN_CH, :] = res_ref[0]
    x = xcat_ref[...]                                                  # (16, 256)

    # --- ResnetBlock: norm1 + SiLU -> conv1 + bias + class embedding ---
    h = _group_norm_silu(x, g1_ref[...], b1_ref[...],
                         groups=GROUPS, cpg=C_IN_RES // GROUPS, eps=EPS)
    _build_patches(h, pat1_ref, h=SIDE, w=SIDE)
    e = emb_ref[0]                                                     # (1, EMB_CH)
    se = e * jax.nn.sigmoid(e)                                         # SiLU(emb)
    cemb = jnp.sum(we_ref[...] * se, axis=1, keepdims=True) + be_ref[...]   # (8, 1)
    h = jnp.dot(w1_ref[...], pat1_ref[...], preferred_element_type=f32)     # (8, 256)
    h = h + cb1_ref[...] + cemb

    # --- norm2 + SiLU -> conv2 (zero-initialised weights, still computed) ---
    h = _group_norm_silu(h, g2_ref[...], b2_ref[...],
                         groups=GROUPS, cpg=OUT_CH // GROUPS, eps=EPS)
    _build_patches(h, pat2_ref, h=SIDE, w=SIDE)
    h = jnp.dot(w2_ref[...], pat2_ref[...], preferred_element_type=f32) + cb2_ref[...]

    # --- 1x1 skip connection + residual add ---
    skip = jnp.dot(wsk_ref[...], x, preferred_element_type=f32) + bsk_ref[...]
    h = h + skip                                                       # (8, 256)

    # --- Upsample: nearest 2x (selection matmul, stays in VMEM) -> 3x3 conv ---
    u = jnp.dot(h, s_ref[...], preferred_element_type=f32)             # (8, 1024)
    _build_patches(u, patu_ref, h=SIDE2, w=SIDE2)
    out = (jnp.dot(wup_ref[...], patu_ref[...], preferred_element_type=f32)
           + bup_ref[...])                                             # (8, 1024)
    o_ref[0] = out                                                     # lane-dense store


# ----------------------------- wrapper -----------------------------

def _tapified_weight(w, cin_pad):
    """(Cout, Cin, 3, 3) OIHW -> (Cout, 9*cin_pad), tap-major, channel zero-padded."""
    cout, cin, kh, kw = w.shape
    wt = jnp.transpose(w, (0, 2, 3, 1))                  # (Cout, kh, kw, Cin)
    if cin_pad > cin:
        wt = jnp.pad(wt, ((0, 0), (0, 0), (0, 0), (0, cin_pad - cin)))
    return wt.reshape(cout, kh * kw * cin_pad)


def _upsample_matrix():
    """(P, P2) 0/1 matrix: h_flat @ S == nearest-neighbour 2x upsample (flattened)."""
    q = jnp.arange(P2)
    src = (q // SIDE2 // 2) * SIDE + (q % SIDE2) // 2
    return (jnp.arange(P)[:, None] == src[None, :]).astype(jnp.float32)


def upblock_forward(hidden_nchw, emb, res_hidden_nchw, p):
    n = hidden_nchw.shape[0]

    hid3 = hidden_nchw.reshape(n, PREV_OUT_CH, P)        # NCHW is already C-major
    res3 = res_hidden_nchw.reshape(n, IN_CH, P)
    emb3 = emb.reshape(n, 1, EMB_CH)

    col = lambda v: v.reshape(-1, 1)
    w1k = _tapified_weight(p["w_conv1"], C_PAD)          # (8, 144)
    w2k = _tapified_weight(p["w_conv2"], OUT_CH)         # (8, 72)
    wupk = _tapified_weight(p["w_up"], OUT_CH)           # (8, 72)
    wskk = jnp.pad(p["w_skip"].reshape(OUT_CH, C_IN_RES),
                   ((0, 0), (0, C_PAD - C_IN_RES)))      # (8, 16)
    g1 = col(jnp.pad(p["gamma1"], (0, C_PAD - C_IN_RES)))
    b1 = col(jnp.pad(p["beta1"], (0, C_PAD - C_IN_RES)))
    g2, b2 = col(p["gamma2"]), col(p["beta2"])
    cb1, cb2 = col(p["b_conv1"]), col(p["b_conv2"])
    bsk, bup = col(p["b_skip"]), col(p["b_up"])
    wet = p["w_emb"].T                                   # (8, 16)
    bec = col(p["b_emb"])
    s_up = _upsample_matrix()                            # (256, 1024)

    sample_spec = lambda c: pl.BlockSpec((1, c, P), lambda i: (i, 0, 0))
    const_spec = lambda shape: pl.BlockSpec(shape, lambda i: (0, 0))

    out = pl.pallas_call(
        upblock_kernel,
        out_shape=jax.ShapeDtypeStruct((n, OUT_CH, P2), jnp.float32),
        grid=(n,),
        in_specs=[
            sample_spec(PREV_OUT_CH),                                  # hidden_states
            sample_spec(IN_CH),                                        # res_hidden
            pl.BlockSpec((1, 1, EMB_CH), lambda i: (i, 0, 0)),         # emb
            const_spec((C_PAD, 1)), const_spec((C_PAD, 1)),            # gamma1, beta1
            const_spec((OUT_CH, 9 * C_PAD)), const_spec((OUT_CH, 1)),  # w_conv1, b_conv1
            const_spec((OUT_CH, EMB_CH)), const_spec((OUT_CH, 1)),     # w_emb^T, b_emb
            const_spec((OUT_CH, 1)), const_spec((OUT_CH, 1)),          # gamma2, beta2
            const_spec((OUT_CH, 9 * OUT_CH)), const_spec((OUT_CH, 1)), # w_conv2, b_conv2
            const_spec((OUT_CH, C_PAD)), const_spec((OUT_CH, 1)),      # w_skip, b_skip
            const_spec((OUT_CH, 9 * OUT_CH)), const_spec((OUT_CH, 1)), # w_up, b_up
            const_spec((P, P2)),                                       # upsample matrix
        ],
        out_specs=pl.BlockSpec((1, OUT_CH, P2), lambda i: (i, 0, 0)),
        scratch_shapes=[
            pltpu.VMEM((C_PAD, P), jnp.float32),          # concat(hidden, res), padded
            pltpu.VMEM((9 * C_PAD, P), jnp.float32),      # im2col for conv1
            pltpu.VMEM((9 * OUT_CH, P), jnp.float32),     # im2col for conv2
            pltpu.VMEM((9 * OUT_CH, P2), jnp.float32),    # im2col for upsample conv
        ],
        compiler_params=pltpu.CompilerParams(
            dimension_semantics=("parallel",)),           # megacore split on v7x
    )(hid3, res3, emb3, g1, b1, w1k, cb1, wet, bec, g2, b2,
      w2k, cb2, wskk, bsk, wupk, bup, s_up)

    return out.reshape(n, OUT_CH, SIDE2, SIDE2)           # NCHW (PyTorch convention)


# ----------------------------- parameters -----------------------------

def init_params(key):
    keys = jax.random.split(key, 12)
    nrm = lambda k, shape, s=0.1: s * jax.random.normal(k, shape, jnp.float32)
    return {
        "gamma1": 1.0 + nrm(keys[0], (C_IN_RES,)),
        "beta1": nrm(keys[1], (C_IN_RES,)),
        "w_conv1": nrm(keys[2], (OUT_CH, C_IN_RES, 3, 3)),    # OIHW (PyTorch layout)
        "b_conv1": nrm(keys[3], (OUT_CH,)),
        "w_emb": nrm(keys[4], (EMB_CH, OUT_CH)),
        "b_emb": nrm(keys[5], (OUT_CH,)),
        "gamma2": 1.0 + nrm(keys[6], (OUT_CH,)),
        "beta2": nrm(keys[7], (OUT_CH,)),
        # zero_module(conv2): parameters zeroed at init (matches the PyTorch module)
        "w_conv2": jnp.zeros((OUT_CH, OUT_CH, 3, 3), jnp.float32),
        "b_conv2": jnp.zeros((OUT_CH,), jnp.float32),
        "w_skip": nrm(keys[8], (OUT_CH, C_IN_RES, 1, 1)),
        "b_skip": nrm(keys[9], (OUT_CH,)),
        "w_up": nrm(keys[10], (OUT_CH, OUT_CH, 3, 3)),
        "b_up": nrm(keys[11], (OUT_CH,)),
    }


# ----------------------------- pure-JAX reference -----------------------------

def ref_forward(hidden_nchw, emb, res_hidden_nchw, p):
    x = jnp.concatenate([hidden_nchw, res_hidden_nchw], axis=1)   # (N, 12, 16, 16)

    def gn(v, gamma, beta):
        n, c, hh, ww = v.shape
        cg = c // GROUPS
        vr = v.reshape(n, GROUPS, cg, hh, ww)
        mean = vr.mean(axis=(2, 3, 4), keepdims=True)
        var = ((vr - mean) ** 2).mean(axis=(2, 3, 4), keepdims=True)
        out = ((vr - mean) / jnp.sqrt(var + EPS)).reshape(n, c, hh, ww)
        return out * gamma[None, :, None, None] + beta[None, :, None, None]

    def silu(v):
        return v * jax.nn.sigmoid(v)

    def conv(v, w, b, pad):
        y = lax.conv_general_dilated(
            v, w, (1, 1), [(pad, pad), (pad, pad)],
            dimension_numbers=("NCHW", "OIHW", "NCHW"),
            precision=lax.Precision.HIGHEST)
        return y + b[None, :, None, None]

    h = silu(gn(x, p["gamma1"], p["beta1"]))
    h = conv(h, p["w_conv1"], p["b_conv1"], 1)
    cemb = jnp.dot(silu(emb), p["w_emb"],
                   precision=lax.Precision.HIGHEST) + p["b_emb"]
    h = h + cemb[:, :, None, None]
    h = silu(gn(h, p["gamma2"], p["beta2"]))
    h = conv(h, p["w_conv2"], p["b_conv2"], 1)
    skip = conv(x, p["w_skip"], p["b_skip"], 0)
    h = skip + h
    u = jnp.repeat(jnp.repeat(h, 2, axis=2), 2, axis=3)           # nearest 2x
    return conv(u, p["w_up"], p["b_up"], 1)


# ----------------------------- main -----------------------------

if __name__ == "__main__":
    # Calibrate the rotate direction once (eagerly, before any jit tracing).
    _ROLL_MATCHES_JNP = _probe_roll_matches_jnp()

    key = jax.random.PRNGKey(0)
    kp, kh, kr, ke = jax.random.split(key, 4)
    params = init_params(kp)

    hidden_states = jax.random.normal(kh, (BATCH, PREV_OUT_CH, SIDE, SIDE), jnp.float32)
    res_hidden = jax.random.normal(kr, (BATCH, IN_CH, SIDE, SIDE), jnp.float32)
    emb = jax.random.normal(ke, (BATCH, EMB_CH), jnp.float32)

    out = jax.jit(upblock_forward)(hidden_states, emb, res_hidden, params)
    out = jax.block_until_ready(out)
    assert out.shape == (BATCH, OUT_CH, SIDE2, SIDE2), out.shape

    ref = jax.jit(ref_forward)(hidden_states, emb, res_hidden, params)
    ref = jax.block_until_ready(ref)
    max_err = float(jnp.max(jnp.abs(out - ref)))
    # Tolerance covers DEFAULT (bf16-pass, f32-accumulate) MXU precision in the
    # kernel versus the HIGHEST-precision pure-JAX oracle.
    assert jnp.allclose(out, ref, atol=2e-2, rtol=2e-2), f"max_err={max_err}"

    print("KERNEL_OK")
</pallas_src>

<mosaic_0001>
module attributes {stable_mosaic.version = 11 : i64} {
  func.func @kern(%arg0: memref<8x128xf32, #tpu.memory_space<vmem>>, %arg1: memref<8x128xf32, #tpu.memory_space<vmem>>) attributes {dimension_semantics = [], scalar_prefetch = 0 : i64, scratch_operands = 0 : i64, tpu.core_type = #tpu.core_type<tc>} {
    %c0 = arith.constant 0 : index
    %c0_0 = arith.constant 0 : index
    %0 = vector.load %arg0[%c0, %c0_0] : memref<8x128xf32, #tpu.memory_space<vmem>>, vector<8x128xf32>
    %c1_i32 = arith.constant 1 : i32
    %1 = tpu.dynamic_rotate %0 by %c1_i32 dim 1 : vector<8x128xf32>, i32 -> vector<8x128xf32>
    %c0_1 = arith.constant 0 : index
    %c0_2 = arith.constant 0 : index
    %2 = vector.load %arg1[%c0_1, %c0_2] : memref<8x128xf32, #tpu.memory_space<vmem>>, vector<8x128xf32>
    tpu.vector_store %arg1[%c0_1, %c0_2], %1 {strides = array<i32>} : memref<8x128xf32, #tpu.memory_space<vmem>>, vector<8x128xf32>,
    return
  }
}

</mosaic_0001>

<llo_original>
// kernel: tpu_custom_call.1
$region0: #{tpu_custom_call.1}
  #allocation0 [shape = 'u32[]', space=smem, size = 0x4, offset = 0x4, fixed_abs, tag = 'smem constant byte address 0x4 - core index']
  #allocation1 [shape = 'u32[144,128]{1,0:T(1,128)}', space=vmem, size = 0x12000, scoped, tag = 'internal scratch']
  %s0 = inlined_call_operand.hbm [shape: f32[8,128], index: 0, kind: input, shape index: {}]
  %s1 = inlined_call_operand.hbm [shape: f32[8,128], index: 1, kind: output, shape index: {}]
  %s2 = sld [smem:[#allocation0]]
  $region18: #{tpu_custom_call.1} parent=0
    _
  %s4 = ssub.s32 1, %s2
  %s5 = scalar_select 0, %s4, %s2
  $region1: #{tpu_custom_call.1} parent=0
    #allocation2 [shape = 'u8[4096]{0}', space=vmem, size = 0x1000, scoped, tag = 'input window, operand 0, single buffered']
    #allocation3 [shape = 's32[1]{0}', space=sflag, size = 0x4, scoped, tag = 'scoped memory for tpu_custom_call.1']
    #allocation4 [shape = 's32[1]{0}', space=sflag, size = 0x4, scoped, tag = 'scoped memory for tpu_custom_call.1']
    #allocation5 [shape = 'u8[4096]{0}', space=vmem, size = 0x1000, scoped, tag = 'output window, operand 0, single buffered']
    %6 = vsyncpa [#allocation3], 0
    %7 = vsyncpa [#allocation4], 0
    // Predicated region
    $region2: #{tpu_custom_call.1} parent=1 // pred_check
      _
    $region3: #{tpu_custom_call.1} parent=1 // pred_check_branch
      %9 = sbr.rel (0) target = $region5
    $region4: #{tpu_custom_call.1} parent=1 // pred_region
      %s11 = ssub.s32 128, 128
      %12 = vsyncadd [#allocation3], %s11
      %s14 = sshll.u32 [#allocation2], 4
      %s15 = int_to_ptr.vmem [resolvable:$true] %s14
      %17 = dma.hbm_to_vmem [thread:$0]  %s0, 128, %s15, [#allocation3]
    $region5: #{tpu_custom_call.1} parent=1 // pred_fallthru
      _
    // Predicated region
    $region6: #{tpu_custom_call.1} parent=1 // pred_check
      _
    $region7: #{tpu_custom_call.1} parent=1 // pred_check_branch
      %19 = sbr.rel (0) target = $region9
    $region8: #{tpu_custom_call.1} parent=1 // pred_region
      %20 = dma.done [#allocation3], 128
    $region9: #{tpu_custom_call.1} parent=1 // pred_fallthru
      _
    %v21 = vld [vmem:[#allocation2] sm:$0xff]
    %22 = vrot.lane.b32.xlu0 %v21, 1
    %v23 = vpop.permute.xlu0 %22
    %24 = vst [vmem:[#allocation5] sm:$0xff] %v23
    // Predicated region
    $region10: #{tpu_custom_call.1} parent=1 // pred_check
      _
    $region11: #{tpu_custom_call.1} parent=1 // pred_check_branch
      %26 = sbr.rel (0) target = $region13
    $region12: #{tpu_custom_call.1} parent=1 // pred_region
      %s28 = ssub.s32 128, 128
      %29 = vsyncadd [#allocation4], %s28
      %s31 = sshll.u32 [#allocation5], 4
      %s32 = int_to_ptr.vmem [resolvable:$true] %s31
      %34 = dma.vmem_to_hbm [thread:$0]  %s32, 128, %s1, [#allocation4]
    $region13: #{tpu_custom_call.1} parent=1 // pred_fallthru
      _
    // Predicated region
    $region14: #{tpu_custom_call.1} parent=1 // pred_check
      _
    $region15: #{tpu_custom_call.1} parent=1 // pred_check_branch
      %36 = sbr.rel (0) target = $region17
    $region16: #{tpu_custom_call.1} parent=1 // pred_region
      %37 = dma.done [#allocation4], 128
    $region17: #{tpu_custom_call.1} parent=1 // pred_fallthru
      _
    %38 = vsyncpa [#allocation3], 1
    %39 = vsyncpa [#allocation4], 1

</llo_original>
